<compile_context>
chip_gen: v7x
topology: tpu7x:2x2x1
jax: 0.10.0
libtpu: 0.0.40
codegen_flags: <defaults>
</compile_context>

<pallas_src>
import math

import jax
import jax.numpy as jnp
from jax.experimental import pallas as pl
from jax.experimental.pallas import tpu as pltpu

_LANES = 128


def _round_up(v, m):
    return (v + m - 1) // m * m


def _sublane_floor(dtype):
    """Minimum sublane tile: 8 for 4-byte, 16 for 2-byte, 32 for 1-byte dtypes."""
    return max(8, 32 // jnp.dtype(dtype).itemsize)


# ---------------------------------------------------------------------------
# Fast path: num_in == num_out == 1  ->  y = sigmoid(x * w + b)
#   sigmoid(x*w + b) = 0.5 * tanh(0.5*w*x + 0.5*b) + 0.5
# Pure VPU mul-add + one EUP tanh per element; no MXU, no divide, no overflow.
# ---------------------------------------------------------------------------
def _scale_bias_sigmoid_kernel(x_ref, s_ref, o_ref):
    # x_ref / o_ref: (TR, 128) lane-dense slab in VMEM.
    # s_ref: (2,) scalars in SMEM holding [0.5*w, 0.5*b].
    wh = s_ref[0]
    bh = s_ref[1]
    t = x_ref[...].astype(jnp.float32) * wh + bh               # VPU
    o_ref[...] = (0.5 * jnp.tanh(t) + 0.5).astype(o_ref.dtype)  # EUP tanh


def _scale_bias_sigmoid(x_flat, w_scalar, b_scalar, *, tile_rows=2048):
    n = x_flat.shape[0]
    dtype = x_flat.dtype
    sub = _sublane_floor(dtype)

    # Lane-dense view: pad only up to a multiple of 128 lanes. Ragged row
    # tiles at the end of the grid are masked by Pallas (no tile-multiple pad).
    rows = pl.cdiv(n, _LANES)
    n_lanes = rows * _LANES
    if n_lanes != n:
        x_flat = jnp.pad(x_flat, (0, n_lanes - n))
    x2 = x_flat.reshape(rows, _LANES)

    # Row tile: ~1 MiB f32 blocks; keep >=2 grid steps when there is enough
    # work so dimension_semantics=("parallel",) can feed both v7x TCs.
    if rows <= sub:
        tr = rows                          # single block == full array
    else:
        tr = min(tile_rows, _round_up(rows, sub))
        if pl.cdiv(rows, tr) < 2:
            tr = max(sub, _round_up(pl.cdiv(rows, 2), sub))
    grid = (pl.cdiv(rows, tr),)

    # Fold the tanh half-factors into the SMEM scalars (one fewer VALU op).
    scal = (jnp.stack([jnp.asarray(w_scalar), jnp.asarray(b_scalar)])
            .astype(jnp.float32) * 0.5)

    itemsize = jnp.dtype(dtype).itemsize
    out = pl.pallas_call(
        _scale_bias_sigmoid_kernel,
        out_shape=jax.ShapeDtypeStruct((rows, _LANES), dtype),
        grid=grid,
        in_specs=[
            pl.BlockSpec((tr, _LANES), lambda i: (i, 0)),
            pl.BlockSpec(memory_space=pltpu.MemorySpace.SMEM),   # [w/2, b/2]
        ],
        out_specs=pl.BlockSpec((tr, _LANES), lambda i: (i, 0)),
        compiler_params=pltpu.CompilerParams(
            dimension_semantics=("parallel",)),
        cost_estimate=pl.CostEstimate(
            flops=4 * n_lanes,
            transcendentals=n_lanes,
            bytes_accessed=2 * n_lanes * itemsize),
    )(x2, scal)

    out_flat = out.reshape(-1)
    return out_flat if n_lanes == n else out_flat[:n]


# ---------------------------------------------------------------------------
# General path: y = sigmoid(x @ W^T + b) for arbitrary (D_in, D_out).
# Weight pre-transposed + d_out padded to a 128 multiple in the wrapper;
# optional K grid axis with f32 accumulator for large D_in.
# ---------------------------------------------------------------------------
def _linear_sigmoid_kernel(x_ref, wt_ref, b_ref, o_ref, acc_ref):
    # grid = (m_tiles, k_tiles); k is the reduction axis ("arbitrary").
    @pl.when(pl.program_id(1) == 0)
    def _():
        acc_ref[...] = jnp.zeros_like(acc_ref)

    acc_ref[...] += jnp.dot(x_ref[...], wt_ref[...],
                            preferred_element_type=jnp.float32)

    @pl.when(pl.program_id(1) == pl.num_programs(1) - 1)
    def _():
        y = acc_ref[...] + b_ref[...].astype(jnp.float32)
        o_ref[...] = (0.5 * jnp.tanh(0.5 * y) + 0.5).astype(o_ref.dtype)


def _linear_sigmoid_general(x2, weight, bias, *, tile_m=512, tile_k=512):
    m, d_in = x2.shape
    d_out = weight.shape[0]
    dtype = x2.dtype
    sub = _sublane_floor(dtype)
    itemsize = jnp.dtype(dtype).itemsize

    # Lane-dense output: pad d_out (weight columns + bias) to a multiple of
    # 128 so stores are full unmasked vst and the MXU N-width is filled.
    # For repeated calls, pre-transpose/pad the params once and cache them.
    n_pad = _round_up(d_out, _LANES)
    wt = weight.T                                    # (d_in, d_out)
    b2 = bias.reshape(1, d_out)
    if n_pad != d_out:
        wt = jnp.pad(wt, ((0, 0), (0, n_pad - d_out)))
        b2 = jnp.pad(b2, ((0, 0), (0, n_pad - d_out)))

    # K tiling only when the weight / x slabs would blow VMEM.
    if d_in <= 2048:
        tk, k_pad = d_in, d_in
    else:
        tk = tile_k
        k_pad = _round_up(d_in, tk)
        if k_pad != d_in:
            x2 = jnp.pad(x2, ((0, 0), (0, k_pad - d_in)))
            wt = jnp.pad(wt, ((0, k_pad - d_in), (0, 0)))

    # M tiling: keep >=2 grid steps when possible (v7x megacore); ragged edge
    # blocks are masked, so x / out rows are never padded.
    if m <= sub:
        tm = m
    else:
        tm = min(tile_m, _round_up(m, sub))
        if pl.cdiv(m, tm) < 2:
            tm = max(sub, _round_up(pl.cdiv(m, 2), sub))

    grid = (pl.cdiv(m, tm), k_pad // tk)

    est_vmem = (2 * tm * tk * itemsize        # x (double-buffered)
                + 2 * tk * n_pad * itemsize   # weight
                + 2 * n_pad * itemsize        # bias
                + 2 * tm * n_pad * itemsize   # output
                + tm * n_pad * 4)             # f32 accumulator scratch
    vmem_limit = min(64 * 1024 * 1024,
                     max(int(1.5 * est_vmem), 16 * 1024 * 1024))

    # Note: for very large d_out an additional N grid axis would be added; not
    # needed for the shapes exercised here.
    out = pl.pallas_call(
        _linear_sigmoid_kernel,
        out_shape=jax.ShapeDtypeStruct((m, n_pad), dtype),
        grid=grid,
        in_specs=[
            pl.BlockSpec((tm, tk), lambda i, k: (i, k)),
            pl.BlockSpec((tk, n_pad), lambda i, k: (k, 0)),
            pl.BlockSpec((1, n_pad), lambda i, k: (0, 0)),
        ],
        out_specs=pl.BlockSpec((tm, n_pad), lambda i, k: (i, 0)),
        scratch_shapes=[pltpu.VMEM((tm, n_pad), jnp.float32)],
        compiler_params=pltpu.CompilerParams(
            dimension_semantics=("parallel", "arbitrary"),
            vmem_limit_bytes=vmem_limit),
        cost_estimate=pl.CostEstimate(
            flops=2 * m * k_pad * n_pad,
            transcendentals=m * n_pad,
            bytes_accessed=(m * k_pad + k_pad * n_pad + n_pad + m * n_pad)
                           * itemsize),
    )(x2, wt, b2)

    return out if n_pad == d_out else out[:, :d_out]


# ---------------------------------------------------------------------------
# Public wrapper: torch.nn.Linear convention (feature dim last) + sigmoid.
# ---------------------------------------------------------------------------
def linear_sigmoid(x, weight, bias):
    """y = sigmoid(x @ weight.T + bias), applied over the last dim of x."""
    d_in = x.shape[-1]
    d_out = weight.shape[0]
    lead_shape = x.shape[:-1]

    # Degenerate 1x1 Linear (the spec's num_in = num_out = 1): elementwise
    # scale+bias+sigmoid on the VPU/EUP — no MXU involvement.
    if d_in == 1 and d_out == 1:
        out = _scale_bias_sigmoid(x.reshape(-1), weight[0, 0], bias[0])
        return out.reshape(lead_shape + (1,))

    out = _linear_sigmoid_general(x.reshape(-1, d_in), weight, bias)
    return out.reshape(lead_shape + (d_out,))


def init_linear_params(key, num_in, num_out, dtype=jnp.float32):
    # Deterministic init mimicking torch.nn.Linear: U(-1/sqrt(in), 1/sqrt(in))
    kw, kb = jax.random.split(key)
    bound = 1.0 / math.sqrt(num_in)
    weight = jax.random.uniform(kw, (num_out, num_in), dtype, -bound, bound)
    bias = jax.random.uniform(kb, (num_out,), dtype, -bound, bound)
    return weight, bias


if __name__ == "__main__":
    num_in = 1
    num_out = 1

    key = jax.random.PRNGKey(0)
    k_x, k_p, k_x2, k_p2 = jax.random.split(key, 4)

    # Input consistent with Linear(num_in=1): feature (last) dim == 1.
    x1 = jax.random.normal(k_x, (5, 28, num_in), dtype=jnp.float32)
    weight, bias = init_linear_params(k_p, num_in, num_out)

    out = jax.block_until_ready(linear_sigmoid(x1, weight, bias))
    ref = jax.nn.sigmoid(x1 @ weight.T + bias)
    assert out.shape == (5, 28, num_out), out.shape
    assert jnp.allclose(out, ref, atol=1e-3, rtol=1e-3)

    # Sanity-check the general (D_in, D_out) MXU path as well.
    xg = jax.random.normal(k_x2, (4, 16, 32), dtype=jnp.float32)
    wg, bg = init_linear_params(k_p2, 32, 64)
    outg = jax.block_until_ready(linear_sigmoid(xg, wg, bg))
    refg = jax.nn.sigmoid(xg @ wg.T + bg)
    assert outg.shape == (4, 16, 64), outg.shape
    assert jnp.allclose(outg, refg, atol=1e-3, rtol=1e-3)

    print("KERNEL_OK")
</pallas_src>

<mosaic_0001>
module attributes {stable_mosaic.version = 11 : i64} {
  func.func @_scale_bias_sigmoid_kernel(%arg0: i32, %arg1: memref<2x128xf32, #tpu.memory_space<vmem>>, %arg2: memref<2xf32, #tpu.memory_space<smem>>, %arg3: memref<2x128xf32, #tpu.memory_space<vmem>>) attributes {dimension_semantics = [#tpu.dimension_semantics<parallel>], iteration_bounds = array<i64: 1>, scalar_prefetch = 0 : i64, scratch_operands = 0 : i64, tpu.core_type = #tpu.core_type<tc>, window_params = [{transform_indices = @transform_0, window_bounds = array<i64: 2, 128>}, {transform_indices = @transform_1, window_bounds = array<i64: 2>}, {transform_indices = @transform_2, window_bounds = array<i64: 2, 128>}]} {
    %c0 = arith.constant 0 : index
    %0 = memref.load %arg2[%c0] : memref<2xf32, #tpu.memory_space<smem>>
    %c1 = arith.constant 1 : index
    %1 = memref.load %arg2[%c1] : memref<2xf32, #tpu.memory_space<smem>>
    %c0_0 = arith.constant 0 : index
    %c0_1 = arith.constant 0 : index
    %2 = vector.load %arg1[%c0_0, %c0_1] : memref<2x128xf32, #tpu.memory_space<vmem>>, vector<2x128xf32>
    %3 = vector.broadcast %0 : f32 to vector<2x128xf32>
    %4 = arith.mulf %2, %3 : vector<2x128xf32>
    %5 = vector.broadcast %1 : f32 to vector<2x128xf32>
    %6 = arith.addf %4, %5 : vector<2x128xf32>
    %7 = math.tanh %6 : vector<2x128xf32>
    %cst = arith.constant 5.000000e-01 : f32
    %8 = vector.broadcast %cst : f32 to vector<2x128xf32>
    %9 = arith.mulf %8, %7 : vector<2x128xf32>
    %cst_2 = arith.constant 5.000000e-01 : f32
    %10 = vector.broadcast %cst_2 : f32 to vector<2x128xf32>
    %11 = arith.addf %9, %10 : vector<2x128xf32>
    %c0_3 = arith.constant 0 : index
    %c0_4 = arith.constant 0 : index
    %12 = vector.load %arg3[%c0_3, %c0_4] : memref<2x128xf32, #tpu.memory_space<vmem>>, vector<2x128xf32>
    tpu.vector_store %arg3[%c0_3, %c0_4], %11 {strides = array<i32>} : memref<2x128xf32, #tpu.memory_space<vmem>>, vector<2x128xf32>,
    return
  }
  func.func @transform_0(%arg0: i32) -> (i32, i32) {
    %c0_i32 = arith.constant 0 : i32
    %c0_i32_0 = arith.constant 0 : i32
    return %arg0, %c0_i32 : i32, i32
  }
  func.func @transform_1(%arg0: i32) -> i32 {
    %c0_i32 = arith.constant 0 : i32
    %c0_i32_0 = arith.constant 0 : i32
    return %c0_i32 : i32
  }
  func.func @transform_2(%arg0: i32) -> (i32, i32) {
    %c0_i32 = arith.constant 0 : i32
    %c0_i32_0 = arith.constant 0 : i32
    return %arg0, %c0_i32 : i32, i32
  }
}

</mosaic_0001>

<llo_original>
// kernel: tpu_custom_call.1
$region0: #{tpu_custom_call.1}
  #allocation0 [shape = 'u32[]', space=smem, size = 0x4, offset = 0x4, fixed_abs, tag = 'smem constant byte address 0x4 - core index']
  #allocation1 [shape = 'u32[144,128]{1,0:T(1,128)}', space=vmem, size = 0x12000, scoped, tag = 'internal scratch']
  %s0 = inlined_call_operand.hbm [shape: f32[2,128], index: 0, kind: input, shape index: {}]
  %s1 = inlined_call_operand.vmem [shape: f32[2], index: 1, kind: input, shape index: {}]
  %s2 = inlined_call_operand.hbm [shape: f32[2,128], index: 2, kind: output, shape index: {}]
  %s3 = sld [smem:[#allocation0]]
  $region26: #{tpu_custom_call.1} parent=0
    _
  %s5 = ssub.s32 1, %s3
  %s6 = scalar_select 0, %s5, %s3
  $region1: #{tpu_custom_call.1} parent=0
    #allocation2 [shape = 'u8[1024]{0}', space=vmem, size = 0x400, scoped, tag = 'input window, operand 0, single buffered']
    #allocation3 [shape = 's32[1]{0}', space=sflag, size = 0x4, scoped, tag = 'scoped memory for tpu_custom_call.1']
    #allocation4 [shape = 's32[1]{0}', space=sflag, size = 0x4, scoped, tag = 'scoped memory for tpu_custom_call.1']
    #allocation5 [shape = 's32[1]{0}', space=sflag, size = 0x4, scoped, tag = 'scoped memory for tpu_custom_call.1']
    #allocation6 [shape = 'u8[512]{0}', space=smem, size = 0x200, scoped, tag = 'input window, operand 1, single buffered']
    #allocation7 [shape = 'u8[1024]{0}', space=vmem, size = 0x400, scoped, tag = 'output window, operand 0, single buffered']
    %7 = vsyncpa [#allocation3], 0
    %8 = vsyncpa [#allocation5], 0
    %9 = vsyncpa [#allocation4], 0
    // Predicated region
    $region2: #{tpu_custom_call.1} parent=1 // pred_check
      _
    $region3: #{tpu_custom_call.1} parent=1 // pred_check_branch
      %11 = sbr.rel (0) target = $region5
    $region4: #{tpu_custom_call.1} parent=1 // pred_region
      %s13 = ssub.s32 32, 32
      %14 = vsyncadd [#allocation3], %s13
      %s16 = sshll.u32 [#allocation2], 4
      %s17 = int_to_ptr.vmem [resolvable:$true] %s16
      %19 = dma.hbm_to_vmem [thread:$0]  %s0, 32, %s17, [#allocation3]
    $region5: #{tpu_custom_call.1} parent=1 // pred_fallthru
      _
    // Predicated region
    $region6: #{tpu_custom_call.1} parent=1 // pred_check
      _
    $region7: #{tpu_custom_call.1} parent=1 // pred_check_branch
      %21 = sbr.rel (0) target = $region9
    $region8: #{tpu_custom_call.1} parent=1 // pred_region
      %s23 = ssub.s32 16, 16
      %24 = vsyncadd [#allocation5], %s23
      %s26 = sshll.u32 %s1, 4
      %s27 = int_to_ptr.vmem [resolvable:$true] %s26
      %29 = dma.vmem_to_smem %s27, 16, [#allocation6], [#allocation5]
    $region9: #{tpu_custom_call.1} parent=1 // pred_fallthru
      _
    // Predicated region
    $region10: #{tpu_custom_call.1} parent=1 // pred_check
      _
    $region11: #{tpu_custom_call.1} parent=1 // pred_check_branch
      %31 = sbr.rel (0) target = $region13
    $region12: #{tpu_custom_call.1} parent=1 // pred_region
      %32 = dma.done [#allocation3], 32
    $region13: #{tpu_custom_call.1} parent=1 // pred_fallthru
      _
    // Predicated region
    $region14: #{tpu_custom_call.1} parent=1 // pred_check
      _
    $region15: #{tpu_custom_call.1} parent=1 // pred_check_branch
      %34 = sbr.rel (0) target = $region17
    $region16: #{tpu_custom_call.1} parent=1 // pred_region
      %35 = dma.done [#allocation5], 16
    $region17: #{tpu_custom_call.1} parent=1 // pred_fallthru
      _
    %36 = sfence
    %s37 = sld [smem:[#allocation6]]
    %s38 = sld [smem:[#allocation6 + $0x1]]
    %v39 = vld [vmem:[#allocation2] sm:$0x3]
    %v40 = vstv %s37
    %v41 = vmul.f32 %v39, %v40
    %v42 = vstv %s38
    %v43 = vadd.f32 %v41, %v42
    %v44 = vtanh.pop %v43
    %v45 = vmul.f32 %v44, 0.5
    %v46 = vadd.f32 %v45, 0.5
    %47 = vst [vmem:[#allocation7] sm:$0x3] %v46
    // Predicated region
    $region18: #{tpu_custom_call.1} parent=1 // pred_check
      _
    $region19: #{tpu_custom_call.1} parent=1 // pred_check_branch
      %49 = sbr.rel (0) target = $region21
    $region20: #{tpu_custom_call.1} parent=1 // pred_region
      %s51 = ssub.s32 32, 32
      %52 = vsyncadd [#allocation4], %s51
      %s54 = sshll.u32 [#allocation7], 4
      %s55 = int_to_ptr.vmem [resolvable:$true] %s54
      %57 = dma.vmem_to_hbm [thread:$0]  %s55, 32, %s2, [#allocation4]
    $region21: #{tpu_custom_call.1} parent=1 // pred_fallthru
      _
    // Predicated region
    $region22: #{tpu_custom_call.1} parent=1 // pred_check
      _
    $region23: #{tpu_custom_call.1} parent=1 // pred_check_branch
      %59 = sbr.rel (0) target = $region25
    $region24: #{tpu_custom_call.1} parent=1 // pred_region
      %60 = dma.done [#allocation4], 32
    $region25: #{tpu_custom_call.1} parent=1 // pred_fallthru
      _
    %61 = vsyncpa [#allocation3], 1
    %62 = vsyncpa [#allocation4], 1
    %63 = vsyncpa [#allocation5], 1

</llo_original>
